<compile_context>
chip_gen: v7x
topology: tpu7x:2x2x1
jax: 0.10.0
libtpu: 0.0.40
codegen_flags: <defaults>
</compile_context>

<pallas_src>
import functools

import jax
import jax.numpy as jnp
from jax.experimental import pallas as pl
from jax.experimental.pallas import tpu as pltpu


def _adaptive_span_kernel(cv_ref, attn_ref, tmpl_ref, out_ref, *,
                          inv_ramp, apply_mask, span_len):
    # attn_ref block: (TBH, M, L); cv_ref: (TBH, 1, 1); tmpl_ref: (1, 1, L)
    x = attn_ref[...]
    if apply_mask:
        # Soft span mask, shared by all M query rows of each (b, h).
        mask = (tmpl_ref[...] + cv_ref[...] * span_len) * inv_ramp + 1.0
        mask = jnp.clip(mask, 0.0, 1.0)                 # (TBH, 1, L)
        x = x * mask
    s = jnp.sum(x, axis=-1, keepdims=True)              # (TBH, M, 1)
    # EUP approximate reciprocal + one vmul instead of M*L VPU divides.
    inv = pl.reciprocal(s + 1e-8, approx=True)
    out_ref[...] = (x * inv).astype(out_ref.dtype)


def _largest_divisor_leq(n, cap):
    t = max(1, min(n, cap))
    while n % t:
        t -= 1
    return t


def adaptive_span_forward(attn, current_val, mask_templates, mask_sizes,
                          ramp_size):
    """Mirrors AdaptiveSpan.forward (mask_forward + last-axis renormalization)."""
    B, H, M, L = attn.shape
    bs = current_val.shape[0]
    # PyTorch: mask applied only if attn.size(0) == mask.size(0) (== bs).
    apply_mask = (B == bs)
    # PyTorch mask_forward: template is chosen by x.size(3), and current_val is
    # scaled by x.size(3) as well (this module scales by the *current* L, not
    # by the fixed attn_span), so span_len = L is the faithful translation.
    tmpl = mask_templates[0] if L == mask_sizes[0] else mask_templates[1]
    tmpl = jnp.asarray(tmpl, jnp.float32).reshape(1, 1, L)

    BH = B * H
    attn_f = attn.reshape(BH, M, L)
    if apply_mask:
        cv_f = current_val.reshape(BH, 1, 1).astype(jnp.float32)
    else:
        cv_f = jnp.zeros((BH, 1, 1), jnp.float32)       # unused in this branch

    # Fuse many (b, h) rows per grid step: target ~2 MiB attn blocks so the
    # memory-bound kernel runs near the HBM roofline instead of paying the
    # ~0.35 us per-grid-step overhead on tiny tiles.  Never split L (it is
    # both the reduction axis and the 128-lane output axis); split only the
    # fused BH axis.  Keep >= 2 grid steps so both v7x TensorCores get work.
    itemsize = jnp.dtype(attn.dtype).itemsize
    row_bytes = M * L * itemsize
    cap = max(1, (2 << 20) // max(1, row_bytes))
    if BH >= 2:
        cap = min(cap, max(1, BH // 2))
    tbh = _largest_divisor_leq(BH, cap)
    grid = (BH // tbh,)

    # VMEM budget: double-buffered input + output blocks (+ tiny cv / tmpl),
    # sized explicitly with headroom so it also fits v7x's smaller VMEM.
    block_bytes = tbh * row_bytes
    vmem_limit = int(min(max(4 * block_bytes + (2 << 20), 8 << 20), 48 << 20))

    kernel = functools.partial(
        _adaptive_span_kernel,
        inv_ramp=1.0 / float(ramp_size),
        apply_mask=apply_mask,
        span_len=float(L),
    )

    # NOTE: if the caller does not need `attn` afterwards, adding
    # input_output_aliases={1: 0} would drop the extra HBM output allocation.
    # NOTE: the L == mask_sizes[1] (=64) branch stores 64-wide lanes; if that
    # branch is hot, fold axes at the wrapper level to keep the output last
    # dim a multiple of 128.  Do not split L further.
    out = pl.pallas_call(
        kernel,
        out_shape=jax.ShapeDtypeStruct((BH, M, L), attn.dtype),
        grid_spec=pltpu.PrefetchScalarGridSpec(
            num_scalar_prefetch=0,
            grid=grid,
            in_specs=[
                pl.BlockSpec((tbh, 1, 1), lambda i: (i, 0, 0)),  # current_val
                pl.BlockSpec((tbh, M, L), lambda i: (i, 0, 0)),  # attn tile
                pl.BlockSpec((1, 1, L), lambda i: (0, 0, 0)),    # template (grid-invariant)
            ],
            out_specs=pl.BlockSpec((tbh, M, L), lambda i: (i, 0, 0)),
        ),
        compiler_params=pltpu.CompilerParams(
            dimension_semantics=("parallel",),
            vmem_limit_bytes=vmem_limit,
        ),
    )(cv_f, attn_f, tmpl)
    return out.reshape(B, H, M, L)


if __name__ == "__main__":
    key = jax.random.PRNGKey(0)
    k_cv, k_attn = jax.random.split(key)

    # Module hyper-parameters (small, consistent with __init__)
    bs, nb_heads = 2, 4
    M = 8                      # number of query rows in the attention matrix
    attn_span = 128
    mask_size = (128, 64)
    adapt_span_ramp = 32
    adapt_span_init = 0.1

    # current_val = kaiming_normal(shape=(bs, nb_heads, 1, 1)) + init_val
    # (kaiming_normal fan_in for this shape is nb_heads -> std = sqrt(2/fan_in))
    std = (2.0 / nb_heads) ** 0.5
    current_val = (jax.random.normal(k_cv, (bs, nb_heads, 1, 1), jnp.float32) * std
                   + adapt_span_init)

    mask_template_0 = jnp.linspace(1.0 - mask_size[0], 0.0, mask_size[0],
                                   dtype=jnp.float32)
    mask_template_1 = jnp.linspace(1.0 - mask_size[1], 0.0, mask_size[1],
                                   dtype=jnp.float32)

    # Example attention tensor: last dim == mask_size[0] branch
    attn = jax.random.uniform(k_attn, (bs, nb_heads, M, mask_size[0]),
                              dtype=jnp.float32)

    out = adaptive_span_forward(attn, current_val,
                                (mask_template_0, mask_template_1),
                                mask_size, adapt_span_ramp)
    out = jax.block_until_ready(out)

    # Pure-JAX reference of the PyTorch forward (exact divide).
    L = attn.shape[-1]
    mask_ref = jnp.clip((mask_template_0 + current_val * L) / adapt_span_ramp + 1.0,
                        0.0, 1.0)
    x_ref = attn * mask_ref
    ref = x_ref / (jnp.sum(x_ref, axis=-1, keepdims=True) + 1e-8)

    assert out.shape == attn.shape
    # Tolerance accounts for the in-kernel approximate (EUP) reciprocal.
    assert jnp.allclose(out, ref, rtol=1e-2, atol=1e-5), \
        float(jnp.max(jnp.abs(out - ref)))

    print("KERNEL_OK")
</pallas_src>

<mosaic_0001>
module attributes {stable_mosaic.version = 11 : i64} {
  func.func @_adaptive_span_kernel(%arg0: i32, %arg1: memref<4x1x1xf32, #tpu.memory_space<vmem>>, %arg2: memref<4x8x128xf32, #tpu.memory_space<vmem>>, %arg3: memref<1x1x128xf32, #tpu.memory_space<vmem>>, %arg4: memref<4x8x128xf32, #tpu.memory_space<vmem>>) attributes {dimension_semantics = [#tpu.dimension_semantics<parallel>], iteration_bounds = array<i64: 2>, scalar_prefetch = 0 : i64, scratch_operands = 0 : i64, tpu.core_type = #tpu.core_type<tc>, window_params = [{transform_indices = @transform_0, window_bounds = array<i64: 4, 1, 1>}, {transform_indices = @transform_1, window_bounds = array<i64: 4, 8, 128>}, {pipeline_mode = #tpu.pipeline_mode<synchronous>, transform_indices = @transform_2, window_bounds = array<i64: 1, 1, 128>}, {transform_indices = @transform_3, window_bounds = array<i64: 4, 8, 128>}]} {
    %c0 = arith.constant 0 : index
    %c0_0 = arith.constant 0 : index
    %c0_1 = arith.constant 0 : index
    %0 = vector.load %arg2[%c0, %c0_0, %c0_1] : memref<4x8x128xf32, #tpu.memory_space<vmem>>, vector<4x8x128xf32>
    %c0_2 = arith.constant 0 : index
    %c0_3 = arith.constant 0 : index
    %c0_4 = arith.constant 0 : index
    %1 = vector.load %arg3[%c0_2, %c0_3, %c0_4] : memref<1x1x128xf32, #tpu.memory_space<vmem>>, vector<1x1x128xf32>
    %c0_5 = arith.constant 0 : index
    %c0_6 = arith.constant 0 : index
    %c0_7 = arith.constant 0 : index
    %2 = vector.load %arg1[%c0_5, %c0_6, %c0_7] : memref<4x1x1xf32, #tpu.memory_space<vmem>>, vector<4x1x1xf32>
    %cst = arith.constant 1.280000e+02 : f32
    %3 = vector.broadcast %cst : f32 to vector<4x1x1xf32>
    %4 = arith.mulf %2, %3 : vector<4x1x1xf32>
    %5 = vector.broadcast %1 : vector<1x1x128xf32> to vector<4x1x128xf32>
    %6 = vector.broadcast %4 : vector<4x1x1xf32> to vector<4x1x128xf32>
    %7 = arith.addf %5, %6 : vector<4x1x128xf32>
    %cst_8 = arith.constant 3.125000e-02 : f32
    %8 = vector.broadcast %cst_8 : f32 to vector<4x1x128xf32>
    %9 = arith.mulf %7, %8 : vector<4x1x128xf32>
    %cst_9 = arith.constant 1.000000e+00 : f32
    %10 = vector.broadcast %cst_9 : f32 to vector<4x1x128xf32>
    %11 = arith.addf %9, %10 : vector<4x1x128xf32>
    %cst_10 = arith.constant 0.000000e+00 : f32
    %cst_11 = arith.constant 1.000000e+00 : f32
    %12 = vector.broadcast %cst_10 : f32 to vector<4x1x128xf32>
    %13 = arith.maximumf %12, %11 : vector<4x1x128xf32>
    %14 = vector.broadcast %cst_11 : f32 to vector<4x1x128xf32>
    %15 = arith.minimumf %14, %13 : vector<4x1x128xf32>
    %16 = vector.broadcast %15 : vector<4x1x128xf32> to vector<4x8x128xf32>
    %17 = arith.mulf %0, %16 : vector<4x8x128xf32>
    %cst_12 = arith.constant dense<0.000000e+00> : vector<4x8xf32>
    %18 = vector.multi_reduction <add>, %17, %cst_12 [2] : vector<4x8x128xf32> to vector<4x8xf32>
    %19 = vector.shape_cast %18 : vector<4x8xf32> to vector<4x8x1xf32>
    %cst_13 = arith.constant 9.99999993E-9 : f32
    %20 = vector.broadcast %cst_13 : f32 to vector<4x8x1xf32>
    %21 = arith.addf %19, %20 : vector<4x8x1xf32>
    %22 = tpu.reciprocal %21 {approx = true} : vector<4x8x1xf32> -> vector<4x8x1xf32>
    %23 = vector.broadcast %22 : vector<4x8x1xf32> to vector<4x8x128xf32>
    %24 = arith.mulf %17, %23 : vector<4x8x128xf32>
    %c0_14 = arith.constant 0 : index
    %c0_15 = arith.constant 0 : index
    %c0_16 = arith.constant 0 : index
    %25 = vector.load %arg4[%c0_14, %c0_15, %c0_16] : memref<4x8x128xf32, #tpu.memory_space<vmem>>, vector<4x8x128xf32>
    tpu.vector_store %arg4[%c0_14, %c0_15, %c0_16], %24 {strides = array<i32>} : memref<4x8x128xf32, #tpu.memory_space<vmem>>, vector<4x8x128xf32>,
    return
  }
  func.func @transform_0(%arg0: i32) -> (i32, i32, i32) {
    %c0_i32 = arith.constant 0 : i32
    %c0_i32_0 = arith.constant 0 : i32
    %c0_i32_1 = arith.constant 0 : i32
    return %arg0, %c0_i32, %c0_i32_0 : i32, i32, i32
  }
  func.func @transform_1(%arg0: i32) -> (i32, i32, i32) {
    %c0_i32 = arith.constant 0 : i32
    %c0_i32_0 = arith.constant 0 : i32
    %c0_i32_1 = arith.constant 0 : i32
    return %arg0, %c0_i32, %c0_i32_0 : i32, i32, i32
  }
  func.func @transform_2(%arg0: i32) -> (i32, i32, i32) {
    %c0_i32 = arith.constant 0 : i32
    %c0_i32_0 = arith.constant 0 : i32
    %c0_i32_1 = arith.constant 0 : i32
    %c0_i32_2 = arith.constant 0 : i32
    return %c0_i32, %c0_i32_0, %c0_i32_1 : i32, i32, i32
  }
  func.func @transform_3(%arg0: i32) -> (i32, i32, i32) {
    %c0_i32 = arith.constant 0 : i32
    %c0_i32_0 = arith.constant 0 : i32
    %c0_i32_1 = arith.constant 0 : i32
    return %arg0, %c0_i32, %c0_i32_0 : i32, i32, i32
  }
}

</mosaic_0001>

<llo_original>
// kernel: tpu_custom_call.1
$region0: #{tpu_custom_call.1}
  #allocation0 [shape = 'u32[]', space=smem, size = 0x4, offset = 0x4, fixed_abs, tag = 'smem constant byte address 0x4 - core index']
  #allocation1 [shape = 'u32[144,128]{1,0:T(1,128)}', space=vmem, size = 0x12000, scoped, tag = 'internal scratch']
  %s0 = inlined_call_operand.vmem [shape: f32[8,1,1], index: 0, kind: input, shape index: {}]
  %s1 = inlined_call_operand.hbm [shape: f32[8,8,128], index: 1, kind: input, shape index: {}]
  %s2 = inlined_call_operand.vmem [shape: f32[1,1,128], index: 2, kind: input, shape index: {}]
  %s3 = inlined_call_operand.hbm [shape: f32[8,8,128], index: 3, kind: output, shape index: {}]
  %s4 = sld [smem:[#allocation0]]
  $region49: #{tpu_custom_call.1} parent=0
    _
  %s6 = ssub.s32 1, %s4
  %s7 = scalar_select 0, %s6, %s4
  $region1: #{tpu_custom_call.1} parent=0
    #allocation2 [shape = 'u8[32768]{0}', space=vmem, size = 0x8000, scoped, tag = 'input window, operand 1']
    #allocation3 [shape = 's32[2]{0}', space=sflag, size = 0x8, scoped, tag = 'scoped memory for tpu_custom_call.1']
    #allocation4 [shape = 's32[2]{0}', space=sflag, size = 0x8, scoped, tag = 'scoped memory for tpu_custom_call.1']
    #allocation5 [shape = 'u8[32768]{0}', space=vmem, size = 0x8000, scoped, tag = 'output window, operand 0']
    %8 = vsyncpa [#allocation3], 0
    %s9 = scalar_lea.sflag [#allocation3], 1
    %10 = vsyncpa %s9, 0
    %11 = vsyncpa [#allocation4], 0
    %s12 = scalar_lea.sflag [#allocation4], 1
    %13 = vsyncpa %s12, 0
    loop: start=0, step=1, limit=4
    $region2: #{tpu_custom_call.1} parent=1 // loop_pre_header
      _
    $region3: #{tpu_custom_call.1} parent=1 // loop_header
      %s15 = sphi 0, %s19
      %p16 = scmp.ge.s32.totalorder %s15, 4
      %s25 = sphi 0, %s27
      %s28 = sphi 0, %s25
      %s29 = sphi 0, %s28
      %s45 = sphi 0, %s29
      %s51 = sphi 0, %s53
      %s54 = sphi 0, %s51
      %s55 = sphi 0, %s54
      %s71 = sphi 0, %s55
      %s75 = sphi 0, %s75
      %s77 = sphi 0, %s75
      %s78 = sphi 0, %s77
      %s92 = sphi 0, %s78
      %s98 = sphi 0, %s100
      %s101 = sphi 0, %s98
      %s102 = sphi 0, %s101
      %s118 = sphi 0, %s102
    $region4: #{tpu_custom_call.1} parent=1 // loop_header_branch
      %18 = sbr.rel (%p16) target = $region8
    $region5: #{tpu_custom_call.1} parent=1 // loop_body
      %s20 = ssub.s32 %s15, 1
      %s21 = ssub.s32 %s15, 2
      %s22 = sadd.s32 %s15, 1
      %s23 = ssub.s32 %s15, %s22
      %p24 = scmp.eq.s32.totalorder %s23, 0
      %s26 = sadd.s32 %s25, 1
      %s27 = scalar_select %p24, %s25, %s26
      %p30 = pneg %p24
      %p31 = scmp.eq.s32.totalorder %s15, 1
      %p32 = por %p30, %p31
      %p33 = scmp.ne.s32.totalorder %s25, %s28
      %p34 = scmp.eq.s32.totalorder %s15, 0
      %p35 = por %p33, %p34
      %p36 = scmp.ne.s32.totalorder %s25, %s28
      %p37 = scmp.eq.s32.totalorder %s20, 1
      %p38 = por %p36, %p37
      %p39 = scmp.ne.s32.totalorder %s28, %s29
      %p40 = scmp.eq.s32.totalorder %s20, 0
      %p41 = por %p39, %p40
      %p42 = scmp.ne.s32.totalorder %s28, %s29
      %p43 = scmp.eq.s32.totalorder %s21, 1
      %p44 = por %p42, %p43
      %p46 = scmp.ne.s32.totalorder %s29, %s45
      %p47 = scmp.eq.s32.totalorder %s21, 0
      %p48 = por %p46, %p47
      %s49 = ssub.s32 %s15, %s22
      %p50 = scmp.eq.s32.totalorder %s49, 0
      %s52 = sadd.s32 %s51, 1
      %s53 = scalar_select %p50, %s51, %s52
      %p56 = pneg %p50
      %p57 = scmp.eq.s32.totalorder %s15, 1
      %p58 = por %p56, %p57
      %p59 = scmp.ne.s32.totalorder %s51, %s54
      %p60 = scmp.eq.s32.totalorder %s15, 0
      %p61 = por %p59, %p60
      %p62 = scmp.ne.s32.totalorder %s51, %s54
      %p63 = scmp.eq.s32.totalorder %s20, 1
      %p64 = por %p62, %p63
      %p65 = scmp.ne.s32.totalorder %s54, %s55
      %p66 = scmp.eq.s32.totalorder %s20, 0
      %p67 = por %p65, %p66
      %p68 = scmp.ne.s32.totalorder %s54, %s55
      %p69 = scmp.eq.s32.totalorder %s21, 1
      %p70 = por %p68, %p69
      %p72 = scmp.ne.s32.totalorder %s55, %s71
      %p73 = scmp.eq.s32.totalorder %s21, 0
      %p74 = por %p72, %p73
      %s76 = sadd.s32 %s75, 1
      %p79 = scmp.eq.s32.totalorder %s15, 1
      %p80 = scmp.ne.s32.totalorder %s75, %s77
      %p81 = scmp.eq.s32.totalorder %s15, 0
      %p82 = por %p80, %p81
      %p83 = scmp.ne.s32.totalorder %s75, %s77
      %p84 = scmp.eq.s32.totalorder %s20, 1
      %p85 = por %p83, %p84
      %p86 = scmp.ne.s32.totalorder %s77, %s78
      %p87 = scmp.eq.s32.totalorder %s20, 0
      %p88 = por %p86, %p87
      %p89 = scmp.ne.s32.totalorder %s77, %s78
      %p90 = scmp.eq.s32.totalorder %s21, 1
      %p91 = por %p89, %p90
      %p93 = scmp.ne.s32.totalorder %s78, %s92
      %p94 = scmp.eq.s32.totalorder %s21, 0
      %p95 = por %p93, %p94
      %s96 = ssub.s32 %s15, %s22
      %p97 = scmp.eq.s32.totalorder %s96, 0
      %s99 = sadd.s32 %s98, 1
      %s100 = scalar_select %p97, %s98, %s99
      %p103 = pneg %p97
      %p104 = scmp.eq.s32.totalorder %s15, 1
      %p105 = por %p103, %p104
      %p106 = scmp.ne.s32.totalorder %s98, %s101
      %p107 = scmp.eq.s32.totalorder %s15, 0
      %p108 = por %p106, %p107
      %p109 = scmp.ne.s32.totalorder %s98, %s101
      %p110 = scmp.eq.s32.totalorder %s20, 1
      %p111 = por %p109, %p110
      %p112 = scmp.ne.s32.totalorder %s101, %s102
      %p113 = scmp.eq.s32.totalorder %s20, 0
      %p114 = por %p112, %p113
      %p115 = scmp.ne.s32.totalorder %s101, %s102
      %p116 = scmp.eq.s32.totalorder %s21, 1
      %p117 = por %p115, %p116
      %p119 = scmp.ne.s32.totalorder %s102, %s118
      %p120 = scmp.eq.s32.totalorder %s21, 0
      %p121 = por %p119, %p120
      %p122 = scmp.le.s32.totalorder 1, %s15
      %p123 = scmp.lt.s32.totalorder %s15, 3
      %p124 = pnand %p122, %p123
      %p125 = pneg %p124
      // Predicated region
      $region9: #{tpu_custom_call.1} parent=5 // pred_check
        _
      $region10: #{tpu_custom_call.1} parent=5 // pred_check_branch
        %127 = sbr.rel (%p124) target = $region12
      $region11: #{tpu_custom_call.1} parent=5 // pred_region
        %s128 = ssub.s32 %s15, 1
        // Predicated region
        $region13: #{tpu_custom_call.1} parent=11 // pred_check
          %p129 = pneg %p88
        $region14: #{tpu_custom_call.1} parent=11 // pred_check_branch
          %131 = sbr.rel (%p129) target = $region16
        $region15: #{tpu_custom_call.1} parent=11 // pred_region
          _
        $region16: #{tpu_custom_call.1} parent=11 // pred_fallthru
          _
      $region12: #{tpu_custom_call.1} parent=5 // pred_fallthru
        _
      %p132 = scmp.lt.s32.totalorder %s15, 2
      // Predicated region
      $region17: #{tpu_custom_call.1} parent=5 // pred_check
        %p133 = pneg %p132
      $region18: #{tpu_custom_call.1} parent=5 // pred_check_branch
        %135 = sbr.rel (%p133) target = $region20
      $region19: #{tpu_custom_call.1} parent=5 // pred_region
        // Predicated region
        $region21: #{tpu_custom_call.1} parent=19 // pred_check
          %p136 = pneg %p35
        $region22: #{tpu_custom_call.1} parent=19 // pred_check_branch
          %138 = sbr.rel (%p136) target = $region24
        $region23: #{tpu_custom_call.1} parent=19 // pred_region
          %s139 = smul.u32 4, %s15
          %p140 = scmp.lt.s32.totalorder %s139, 7
          %s141 = scalar_select %p140, %s139, 7
          %s142 = scalar_lea.vmem %s0, %s141
          %s143 = smul.u32 4, %s15
        $region24: #{tpu_custom_call.1} parent=19 // pred_fallthru
          _
        // Predicated region
        $region25: #{tpu_custom_call.1} parent=19 // pred_check
          %p144 = pneg %p61
        $region26: #{tpu_custom_call.1} parent=19 // pred_check_branch
          %146 = sbr.rel (%p144) target = $region28
        $region27: #{tpu_custom_call.1} parent=19 // pred_region
          %s147 = sand.u32 %s51, 1
          %s148 = scalar_lea.sflag [#allocation3], %s147
          %s149 = sand.u32 %s51, 1
          %s150 = smul.addr %s149, 32
          %s151 = scalar_lea.vmem [#allocation2], %s150
          %s152 = smul.u32 4, %s15
          %s154 = ssub.s32 512, 512
          %155 = vsyncadd %s148, %s154
          %s156 = smul.addr %s152, 128
          %s157 = scalar_lea.hbm %s1, %s156
          %s158 = sshll.u32 %s151, 4
          %s159 = int_to_ptr.vmem [resolvable:$true] %s158
          %164 = dma.hbm_to_vmem [thread:$0]  %s157, 512, %s159, %s148, 128, 128, 8
        $region28: #{tpu_custom_call.1} parent=19 // pred_fallthru
          _
      $region20: #{tpu_custom_call.1} parent=5 // pred_fallthru
        _
      %p165 = scmp.le.s32.totalorder 1, %s15
      %p166 = scmp.lt.s32.totalorder %s15, 3
      %p167 = pnand %p165, %p166
      %p168 = pneg %p167
      // Predicated region
      $region29: #{tpu_custom_call.1} parent=5 // pred_check
        _
      $region30: #{tpu_custom_call.1} parent=5 // pred_check_branch
        %170 = sbr.rel (%p167) target = $region32
      $region31: #{tpu_custom_call.1} parent=5 // pred_region
        %s171 = ssub.s32 %s15, 1
        %s172 = sand.u32 %s54, 1
        %s173 = scalar_lea.sflag [#allocation3], %s172
        %s174 = sand.u32 %s54, 1
        %s175 = smul.addr %s174, 32
        %s176 = scalar_lea.vmem [#allocation2], %s175
        // Predicated region
        $region33: #{tpu_custom_call.1} parent=31 // pred_check
          %p177 = pneg %p67
        $region34: #{tpu_custom_call.1} parent=31 // pred_check_branch
          %179 = sbr.rel (%p177) target = $region36
        $region35: #{tpu_custom_call.1} parent=31 // pred_region
          %180 = dma.done %s173, 512
        $region36: #{tpu_custom_call.1} parent=31 // pred_fallthru
          _
        %s181 = smul.u32 4, %s20
        %p182 = scmp.lt.s32.totalorder %s181, 7
        %s183 = scalar_select %p182, %s181, 7
        %s184 = scalar_lea.vmem %s0, %s183
        %p185 = pneg %p41
        %p186 = pneg %p38
        %s187 = sand.u32 %s54, 1
        %s188 = scalar_lea.sflag [#allocation3], %s187
        %s189 = sand.u32 %s54, 1
        %s190 = smul.addr %s189, 32
        %s191 = scalar_lea.vmem [#allocation2], %s190
        %p192 = pneg %p67
        %p193 = pneg %p64
        %p194 = pneg %p88
        %p195 = pneg %p85
        %p196 = pneg %p114
        %p197 = pneg %p111
        %s198 = sand.u32 %s101, 1
        %s199 = scalar_lea.sflag [#allocation4], %s198
        %s200 = sand.u32 %s101, 1
        %s201 = smul.addr %s200, 32
        %s202 = scalar_lea.vmem [#allocation5], %s201
        %s203 = smul.u32 4, %s20
        %p204 = scmp.lt.s32.totalorder %s203, 7
        %s205 = scalar_select %p204, %s203, 7
        %s206 = scalar_lea.vmem %s0, %s205
        %s207 = smul.u32 4, %s20
        %s208 = smul.u32 4, %s20
        %s209 = smul.u32 4, %s20
        %v210 = vld [vmem:[%s176] sm:$0xff]
        %v211 = vld [vmem:[%s176 + $0x8] sm:$0xff]
        %v212 = vld [vmem:[%s176 + $0x10] sm:$0xff]
        %v213 = vld [vmem:[%s176 + $0x18] sm:$0xff]
        %v214 = vld [vmem:[%s2] sm:$0x1]
        %v215 = vld [vmem:[%s206] sm:$0x1]
        %v216 = vld [vmem:[%s206 + $0x1] sm:$0x1]
        %v217 = vld [vmem:[%s206 + $0x2] sm:$0x1]
        %v218 = vld [vmem:[%s206 + $0x3] sm:$0x1]
        %v219 = vmul.f32 %v215, 128.0
        %v220 = vmul.f32 %v216, 128.0
        %v221 = vmul.f32 %v217, 128.0
        %v222 = vmul.f32 %v218, 128.0
        %224 = vset.pattern.permute.xlu0 0
        %225 = vperm.xlu0 %224, %v219
        %v226 = vpop.permute.xlu0 %225
        %v228 = vlaneseq
        %v229 = vshrl.u32 %v228, 7
        %v230 = vsub.s32 0, %v229
        %v231 = vrot.slane %v226, %v230
        %233 = vset.pattern.permute.xlu0 0
        %234 = vperm.xlu0 %233, %v220
        %v235 = vpop.permute.xlu0 %234
        %v237 = vlaneseq
        %v238 = vshrl.u32 %v237, 7
        %v239 = vsub.s32 0, %v238
        %v240 = vrot.slane %v235, %v239
        %242 = vset.pattern.permute.xlu0 0
        %243 = vperm.xlu0 %242, %v221
        %v244 = vpop.permute.xlu0 %243
        %v246 = vlaneseq
        %v247 = vshrl.u32 %v246, 7
        %v248 = vsub.s32 0, %v247
        %v249 = vrot.slane %v244, %v248
        %251 = vset.pattern.permute.xlu0 0
        %252 = vperm.xlu0 %251, %v222
        %v253 = vpop.permute.xlu0 %252
        %v255 = vlaneseq
        %v256 = vshrl.u32 %v255, 7
        %v257 = vsub.s32 0, %v256
        %v258 = vrot.slane %v253, %v257
        %v259 = vadd.f32 %v214, %v231
        %v260 = vadd.f32 %v214, %v240
        %v261 = vadd.f32 %v214, %v249
        %v262 = vadd.f32 %v214, %v258
        %v263 = vmul.f32 %v259, 0.03125
        %v264 = vmul.f32 %v260, 0.03125
        %v265 = vmul.f32 %v261, 0.03125
        %v266 = vmul.f32 %v262, 0.03125
        %v267 = vadd.f32 %v263, 1.0
        %v268 = vadd.f32 %v264, 1.0
        %v269 = vadd.f32 %v265, 1.0
        %v270 = vadd.f32 %v266, 1.0
        %v271 = vmax.f32 %v267, 0.0
        %v272 = vmax.f32 %v268, 0.0
        %v273 = vmax.f32 %v269, 0.0
        %v274 = vmax.f32 %v270, 0.0
        %v275 = vmin.f32 %v271, 1.0
        %v276 = vmin.f32 %v272, 1.0
        %v277 = vmin.f32 %v273, 1.0
        %v278 = vmin.f32 %v274, 1.0
        %v283 = vlaneseq
        %v284 = vshrl.u32 %v283, 7
        %v285 = vsub.s32 0, %v284
        %v286 = vrot.slane %v275, %v285
        %v287 = vlaneseq
        %v288 = vshrl.u32 %v287, 7
        %v289 = vsub.s32 0, %v288
        %v290 = vrot.slane %v276, %v289
        %v291 = vlaneseq
        %v292 = vshrl.u32 %v291, 7
        %v293 = vsub.s32 0, %v292
        %v294 = vrot.slane %v277, %v293
        %v295 = vlaneseq
        %v296 = vshrl.u32 %v295, 7
        %v297 = vsub.s32 0, %v296
        %v298 = vrot.slane %v278, %v297
        %v303 = vmul.f32 %v210, %v286
        %v304 = vmul.f32 %v211, %v290
        %v305 = vmul.f32 %v212, %v294
        %v306 = vmul.f32 %v213, %v298
        %307 = vadd.xlane.f32.xlu0 %v303
        %v308 = vpop.xlane.xlu0 %307
        %309 = vadd.xlane.f32.xlu0 %v304
        %v310 = vpop.xlane.xlu0 %309
        %311 = vadd.xlane.f32.xlu0 %v305
        %v312 = vpop.xlane.xlu0 %311
        %313 = vadd.xlane.f32.xlu0 %v306
        %v314 = vpop.xlane.xlu0 %313
        %v315 = vadd.f32 %v308, 1e-08
        %v316 = vadd.f32 %v310, 1e-08
        %v317 = vadd.f32 %v312, 1e-08
        %v318 = vadd.f32 %v314, 1e-08
        %v319 = vrcp.pop %v315
        %v320 = vrcp.pop %v316
        %v321 = vrcp.pop %v317
        %v322 = vrcp.pop %v318
        %v323 = vmul.f32 %v303, %v319
        %v324 = vmul.f32 %v304, %v320
        %v325 = vmul.f32 %v305, %v321
        %v326 = vmul.f32 %v306, %v322
        %327 = vst [vmem:[%s202] sm:$0xff] %v323
        %328 = vst [vmem:[%s202 + $0x8] sm:$0xff] %v324
        %329 = vst [vmem:[%s202 + $0x10] sm:$0xff] %v325
        %330 = vst [vmem:[%s202 + $0x18] sm:$0xff] %v326
        %s331 = sand.u32 %s101, 1
        %s332 = scalar_lea.sflag [#allocation4], %s331
        %s333 = sand.u32 %s101, 1
        %s334 = smul.addr %s333, 32
        %s335 = scalar_lea.vmem [#allocation5], %s334
        // Predicated region
        $region37: #{tpu_custom_call.1} parent=31 // pred_check
          %p336 = pneg %p111
        $region38: #{tpu_custom_call.1} parent=31 // pred_check_branch
          %338 = sbr.rel (%p336) target = $region40
        $region39: #{tpu_custom_call.1} parent=31 // pred_region
          %s339 = smul.u32 4, %s20
          %s341 = ssub.s32 512, 512
          %342 = vsyncadd %s332, %s341
          %s343 = smul.addr %s339, 128
          %s344 = scalar_lea.hbm %s3, %s343
          %s345 = sshll.u32 %s335, 4
          %s346 = int_to_ptr.vmem [resolvable:$true] %s345
          %351 = dma.vmem_to_hbm [thread:$0]  %s346, 512, %s344, %s332, 128, 128, 8
        $region40: #{tpu_custom_call.1} parent=31 // pred_fallthru
          _
      $region32: #{tpu_custom_call.1} parent=5 // pred_fallthru
        _
      %p352 = scmp.le.s32.totalorder 2, %s15
      // Predicated region
      $region41: #{tpu_custom_call.1} parent=5 // pred_check
        %p353 = pneg %p352
      $region42: #{tpu_custom_call.1} parent=5 // pred_check_branch
        %355 = sbr.rel (%p353) target = $region44
      $region43: #{tpu_custom_call.1} parent=5 // pred_region
        %s356 = ssub.s32 %s15, 2
        // Predicated region
        $region45: #{tpu_custom_call.1} parent=43 // pred_check
          %p357 = pneg %p117
        $region46: #{tpu_custom_call.1} parent=43 // pred_check_branch
          %359 = sbr.rel (%p357) target = $region48
        $region47: #{tpu_custom_call.1} parent=43 // pred_region
          %s360 = sand.u32 %s102, 1
          %s361 = scalar_lea.sflag [#allocation4], %s360
          %s362 = sand.u32 %s102, 1
          %s363 = smul.addr %s362, 32
          %s364 = scalar_lea.vmem [#allocation5], %s363
          %365 = dma.done %s361, 512
        $region48: #{tpu_custom_call.1} parent=43 // pred_fallthru
          _
      $region44: #{tpu_custom_call.1} parent=5 // pred_fallthru
        _
    $region6: #{tpu_custom_call.1} parent=1 // loop_footer
      %s19 = sadd.s32 1, %s15
    $region7: #{tpu_custom_call.1} parent=1 // loop_footer_branch
      %14 = sbr.rel target = $region3
    $region8: #{tpu_custom_call.1} parent=1 // loop_exit
      _
    %366 = vsyncpa [#allocation3], 1
    %s367 = scalar_lea.sflag [#allocation3], 1
    %368 = vsyncpa %s367, 1
    %369 = vsyncpa [#allocation4], 1
    %s370 = scalar_lea.sflag [#allocation4], 1
    %371 = vsyncpa %s370, 1

</llo_original>
